<compile_context>
chip_gen: v7x
topology: tpu7x:2x2x1
jax: 0.10.0
libtpu: 0.0.40
codegen_flags: <defaults>
</compile_context>

<pallas_src>
import functools

import jax
import jax.numpy as jnp
from jax import lax
from jax.experimental import pallas as pl
from jax.experimental.pallas import tpu as pltpu

NUM_CLASSES = 3
LANES = 128
ROW_BLK_TARGET = 4096            # 4096 rows * 128 lanes = 524288 px per step
VMEM_LIMIT_BYTES = 40 * 1024 * 1024
NCNT = 7                         # [pred0, pred1, tgt0, tgt1, tp0, tp1, tp2]


def _count_kernel(x_ref, t_ref, out_ref, *, rows, row_blk, cpc,
                  first_masked, needs_mask, dense_targets):
    """Accumulate class / diagonal pixel counts for one (batch, core, chunk).

    x_ref   : (C, row_blk, 128) logits for this pixel chunk.
    t_ref   : (C, row_blk, 128) target scores  (dense_targets=True)
              or (row_blk, 128) integer labels (dense_targets=False).
    out_ref : (NCNT, 8, 128) float32 per-(batch, core) count accumulators.
    """
    c_id = pl.program_id(1)
    j = pl.program_id(2)
    chunk = c_id * cpc + j          # logical chunk index along the pixel axis

    @pl.when(j == 0)
    def _():
        out_ref[...] = jnp.zeros_like(out_ref)

    # Channel planes, each (row_blk, 128) -- naturally vreg shaped.
    x0, x1, x2 = x_ref[0], x_ref[1], x_ref[2]
    if dense_targets:
        t0, t1, t2 = t_ref[0], t_ref[1], t_ref[2]
    else:
        lab = t_ref[...]

    def accumulate(c, m):
        mf = m.astype(jnp.float32)
        if row_blk % 8 == 0:
            # Pure full-vreg VALU adds; one full-tile RMW per class per step.
            out_ref[c] += jnp.sum(mf.reshape(row_blk // 8, 8, LANES), axis=0)
        else:
            # Tiny-input fallback (row_blk == rows < 8-aligned): one narrow RMW.
            out_ref[c, 0:1] += jnp.sum(mf, axis=0, keepdims=True)

    def update(valid):
        # First-max argmax over 3 channels (matches torch.max(., 1).indices);
        # softmax is argmax-preserving, so it is skipped entirely.
        p0 = (x0 >= x1) & (x0 >= x2)
        p1 = (x1 > x0) & (x1 >= x2)
        if dense_targets:
            q0 = (t0 >= t1) & (t0 >= t2)
            q1 = (t1 > t0) & (t1 >= t2)
        else:
            q0 = lab == 0
            q1 = lab == 1
        d2 = jnp.logical_not(p0 | p1) & jnp.logical_not(q0 | q1)
        if valid is not None:
            p0 = p0 & valid
            p1 = p1 & valid
            q0 = q0 & valid
            q1 = q1 & valid
            d2 = d2 & valid
        d0 = p0 & q0
        d1 = p1 & q1
        for c, m in enumerate((p0, p1, q0, q1, d0, d1, d2)):
            accumulate(c, m)

    if not needs_mask:
        update(None)
    else:
        @pl.when(chunk < first_masked)
        def _():
            update(None)

        @pl.when(chunk >= first_masked)
        def _():
            # Partial edge chunk (stale rows past `rows`) or a fully
            # out-of-range chunk created by the 2-way core split (its block
            # index was clamped in the index_map; mask kills it entirely).
            row = lax.broadcasted_iota(jnp.int32, (row_blk, LANES), 0)
            update((chunk * row_blk + row) < rows)


def _kernel_counts(x4, t_arg, *, dense, row_blk_opt):
    """Run the Pallas kernel over 128-aligned pixels; return (NCNT,) int32."""
    N, C, rows, _ = x4.shape

    row_blk = rows if rows <= ROW_BLK_TARGET else ROW_BLK_TARGET
    if row_blk_opt is not None:
        row_blk = min(row_blk_opt, rows)
    if row_blk < rows and row_blk % 8 != 0:
        row_blk = min(((row_blk + 7) // 8) * 8, rows)

    num_chunks = pl.cdiv(rows, row_blk)
    # Pixel-axis core split so both v7x TensorCores get work even at N == 1.
    core_split = 2 if num_chunks >= 2 else 1
    cpc = pl.cdiv(num_chunks, core_split)
    total_chunks = core_split * cpc
    needs_mask = (total_chunks * row_blk) != rows
    first_masked = rows // row_blk

    kernel = functools.partial(
        _count_kernel, rows=rows, row_blk=row_blk, cpc=cpc,
        first_masked=first_masked, needs_mask=needs_mask, dense_targets=dense)

    def x_map(b, c, j):
        return (b, 0, jnp.minimum(c * cpc + j, num_chunks - 1), 0)

    if dense:
        t_spec = pl.BlockSpec((None, C, row_blk, LANES), x_map)
    else:
        def l_map(b, c, j):
            return (b, jnp.minimum(c * cpc + j, num_chunks - 1), 0)
        t_spec = pl.BlockSpec((None, row_blk, LANES), l_map)

    partials = pl.pallas_call(
        kernel,
        out_shape=jax.ShapeDtypeStruct(
            (N, core_split, NCNT, 8, LANES), jnp.float32),
        grid=(N, core_split, cpc),
        in_specs=[
            pl.BlockSpec((None, C, row_blk, LANES), x_map),
            t_spec,
        ],
        out_specs=pl.BlockSpec((None, None, NCNT, 8, LANES),
                               lambda b, c, j: (b, c, 0, 0, 0)),
        compiler_params=pltpu.CompilerParams(
            dimension_semantics=("parallel", "parallel", "arbitrary"),
            vmem_limit_bytes=VMEM_LIMIT_BYTES,
        ),
    )(x4, t_arg)

    # Exact integer totals (each f32 lane element holds <= HW/1024 counts).
    return jnp.sum(partials.astype(jnp.int32), axis=(0, 1, 3, 4))   # (NCNT,)


def _triples_from_counts(counts, total):
    n_pred = jnp.stack([counts[0], counts[1], total - counts[0] - counts[1]])
    n_tgt = jnp.stack([counts[2], counts[3], total - counts[2] - counts[3]])
    tp = counts[4:7]
    return n_pred, n_tgt, tp


def _jax_triples(x_flat, t_or_lab, dense):
    """Tiny plain-JAX fallback for the <128-px unaligned tail."""
    pred = jnp.argmax(x_flat, axis=1).reshape(-1)
    tgt = (jnp.argmax(t_or_lab, axis=1) if dense else t_or_lab).reshape(-1)
    oh_p = jax.nn.one_hot(pred, NUM_CLASSES, dtype=jnp.int32)
    oh_t = jax.nn.one_hot(tgt, NUM_CLASSES, dtype=jnp.int32)
    return oh_p.sum(0), oh_t.sum(0), jnp.sum(oh_p * oh_t, axis=0)


def _finish_iou(n_pred, n_tgt, tp):
    # IoU_i = tp_i / (fp_i + fn_i + tp_i) = tp_i / (n_pred_i + n_tgt_i - tp_i)
    # (0/0 -> NaN for a class absent from both pred and target, matching the
    #  PyTorch reference behavior).
    iou = tp.astype(jnp.float32) / (n_pred + n_tgt - tp).astype(jnp.float32)
    return jnp.mean(iou)


@functools.partial(jax.jit, static_argnames=("row_blk",))
def iou_multiple(inputs, targets, row_blk=None):
    """Module-matching entry: inputs, targets (N, C, H, W), C == 3.

    Accepts f32 or bf16 `inputs` natively (no wrapper cast). Returns scalar
    mean IoU (f32).  `row_blk` is a test/tuning override of the pixel tile.
    """
    N, C, H, W = inputs.shape
    assert C == NUM_CLASSES and targets.shape == (N, C, H, W)
    HW = H * W
    rows = HW // LANES
    hw_k = rows * LANES

    x = inputs.reshape(N, C, HW)
    t = targets.reshape(N, C, HW)

    n_pred = jnp.zeros((NUM_CLASSES,), jnp.int32)
    n_tgt = jnp.zeros((NUM_CLASSES,), jnp.int32)
    tp = jnp.zeros((NUM_CLASSES,), jnp.int32)

    if rows > 0:
        # Free contiguous reshape when HW is 128-aligned (the common case).
        x4 = x[:, :, :hw_k].reshape(N, C, rows, LANES)
        t4 = t[:, :, :hw_k].reshape(N, C, rows, LANES)
        counts = _kernel_counts(x4, t4, dense=True, row_blk_opt=row_blk)
        a, b, c = _triples_from_counts(counts, N * hw_k)
        n_pred, n_tgt, tp = n_pred + a, n_tgt + b, tp + c
    if hw_k != HW:
        # <=127 leftover pixels per image: plain-JAX glue, no full pad copy.
        a, b, c = _jax_triples(x[:, :, hw_k:], t[:, :, hw_k:], dense=True)
        n_pred, n_tgt, tp = n_pred + a, n_tgt + b, tp + c

    return _finish_iou(n_pred, n_tgt, tp)


@functools.partial(jax.jit, static_argnames=("row_blk",))
def iou_multiple_from_labels(inputs, labels, row_blk=None):
    """Slim fast path: bf16/f32 logits (N, C, H, W) + integer label map (N, H, W).

    Equivalent to iou_multiple(inputs, one_hot(labels)) but with ~3-12x less
    target HBM traffic.  int8 labels are supported too (prefer row_blk a
    multiple of 32 for int8 sublane packing); int32 is used in the demo below.
    """
    N, C, H, W = inputs.shape
    assert C == NUM_CLASSES and labels.shape == (N, H, W)
    HW = H * W
    rows = HW // LANES
    hw_k = rows * LANES

    x = inputs.reshape(N, C, HW)
    lab = labels.reshape(N, HW)

    n_pred = jnp.zeros((NUM_CLASSES,), jnp.int32)
    n_tgt = jnp.zeros((NUM_CLASSES,), jnp.int32)
    tp = jnp.zeros((NUM_CLASSES,), jnp.int32)

    if rows > 0:
        x4 = x[:, :, :hw_k].reshape(N, C, rows, LANES)
        lab3 = lab[:, :hw_k].reshape(N, rows, LANES)
        counts = _kernel_counts(x4, lab3, dense=False, row_blk_opt=row_blk)
        a, b, c = _triples_from_counts(counts, N * hw_k)
        n_pred, n_tgt, tp = n_pred + a, n_tgt + b, tp + c
    if hw_k != HW:
        a, b, c = _jax_triples(x[:, :, hw_k:], lab[:, hw_k:], dense=False)
        n_pred, n_tgt, tp = n_pred + a, n_tgt + b, tp + c

    return _finish_iou(n_pred, n_tgt, tp)


def _reference(inputs, targets):
    """Plain-JAX reference matching the PyTorch forward."""
    pred = jnp.argmax(jax.nn.softmax(inputs, axis=1), axis=1).reshape(-1)
    tgt = jnp.argmax(targets, axis=1).reshape(-1)
    oh_p = jax.nn.one_hot(pred, NUM_CLASSES, dtype=jnp.float32)
    oh_t = jax.nn.one_hot(tgt, NUM_CLASSES, dtype=jnp.float32)
    cm = oh_p.T @ oh_t
    tp = jnp.diagonal(cm)
    fp = jnp.sum(cm, axis=0) - tp
    fn = jnp.sum(cm, axis=1) - tp
    return jnp.mean(tp / (fp + fn + tp))


def _make_dense_targets(labels):
    return jnp.transpose(
        jax.nn.one_hot(labels, NUM_CLASSES, dtype=jnp.float32), (0, 3, 1, 2))


if __name__ == "__main__":
    key = jax.random.PRNGKey(0)
    ks = jax.random.split(key, 6)

    # 1) Module-matching dense-f32 path (N, C, H, W) = (2, 3, 16, 16).
    N, C, H, W = 2, NUM_CLASSES, 16, 16
    x = jax.random.normal(ks[0], (N, C, H, W), dtype=jnp.float32)
    lbl = jax.random.randint(ks[1], (N, H, W), 0, C)
    tgt = _make_dense_targets(lbl)
    out = iou_multiple(x, tgt)
    jax.block_until_ready(out)
    ref = _reference(x, tgt)
    assert jnp.allclose(out, ref, atol=1e-5, equal_nan=True), (out, ref)

    # 2) Slim fast path: bf16 logits + int32 label-map targets.
    out2 = iou_multiple_from_labels(x.astype(jnp.bfloat16), lbl.astype(jnp.int32))
    jax.block_until_ready(out2)
    ref2 = _reference(x.astype(jnp.bfloat16).astype(jnp.float32), tgt)
    assert jnp.allclose(out2, ref2, atol=1e-5, equal_nan=True), (out2, ref2)

    # 3) Multi-chunk + 2-way core split + partial and clamped edge chunks
    #    (forced tiny row_blk so the big-image code paths are exercised).
    N3, H3, W3 = 1, 40, 64           # HW = 2560 -> 20 rows, row_blk = 8
    x3 = jax.random.normal(ks[2], (N3, C, H3, W3), dtype=jnp.float32)
    l3 = jax.random.randint(ks[3], (N3, H3, W3), 0, C)
    t3 = _make_dense_targets(l3)
    out3 = iou_multiple(x3, t3, row_blk=8)
    jax.block_until_ready(out3)
    ref3 = _reference(x3, t3)
    assert jnp.allclose(out3, ref3, atol=1e-5, equal_nan=True), (out3, ref3)

    # 4) Non-128-aligned H*W: aligned prefix via kernel + plain-JAX tail.
    N4, H4, W4 = 2, 18, 18           # HW = 324 -> 2 rows + 68-px tail
    x4 = jax.random.normal(ks[4], (N4, C, H4, W4), dtype=jnp.float32)
    l4 = jax.random.randint(ks[5], (N4, H4, W4), 0, C)
    t4 = _make_dense_targets(l4)
    out4 = iou_multiple(x4, t4)
    jax.block_until_ready(out4)
    ref4 = _reference(x4, t4)
    assert jnp.allclose(out4, ref4, atol=1e-5, equal_nan=True), (out4, ref4)

    print("KERNEL_OK")
</pallas_src>

<mosaic_0001>
module attributes {stable_mosaic.version = 11 : i64} {
  func.func @_count_kernel(%arg0: i32, %arg1: i32, %arg2: i32, %arg3: memref<1x3x2x128xf32, #tpu.memory_space<vmem>>, %arg4: memref<1x3x2x128xf32, #tpu.memory_space<vmem>>, %arg5: memref<1x1x7x8x128xf32, #tpu.memory_space<vmem>>) attributes {dimension_semantics = [#tpu.dimension_semantics<parallel>, #tpu.dimension_semantics<parallel>, #tpu.dimension_semantics<arbitrary>], iteration_bounds = array<i64: 2, 1, 1>, scalar_prefetch = 0 : i64, scratch_operands = 0 : i64, tpu.core_type = #tpu.core_type<tc>, window_params = [{transform_indices = @transform_0, window_bounds = array<i64: 1, 3, 2, 128>}, {transform_indices = @transform_1, window_bounds = array<i64: 1, 3, 2, 128>}, {transform_indices = @transform_2, window_bounds = array<i64: 1, 1, 7, 8, 128>}]} {
    %c0_i32 = arith.constant 0 : i32
    %0 = arith.cmpi eq, %arg2, %c0_i32 : i32
    %1 = arith.extui %0 : i1 to i32
    %c0_i32_0 = arith.constant 0 : i32
    %2 = arith.cmpi ne, %1, %c0_i32_0 : i32
    scf.if %2 {
      %cst_96 = arith.constant 0.000000e+00 : f32
      %104 = vector.broadcast %cst_96 : f32 to vector<7x8x128xf32>
      %c0_97 = arith.constant 0 : index
      %c0_98 = arith.constant 0 : index
      %c0_99 = arith.constant 0 : index
      %c0_100 = arith.constant 0 : index
      %c0_101 = arith.constant 0 : index
      %105 = vector.load %arg5[%c0_97, %c0_98, %c0_99, %c0_100, %c0_101] : memref<1x1x7x8x128xf32, #tpu.memory_space<vmem>>, vector<1x1x7x8x128xf32>
      %106 = vector.shape_cast %105 : vector<1x1x7x8x128xf32> to vector<7x8x128xf32>
      %107 = vector.shape_cast %104 : vector<7x8x128xf32> to vector<1x1x7x8x128xf32>
      tpu.vector_store %arg5[%c0_97, %c0_98, %c0_99, %c0_100, %c0_101], %107 {strides = array<i32>} : memref<1x1x7x8x128xf32, #tpu.memory_space<vmem>>, vector<1x1x7x8x128xf32>,
    } else {
    }
    %c0 = arith.constant 0 : index
    %c0_1 = arith.constant 0 : index
    %c0_2 = arith.constant 0 : index
    %c0_3 = arith.constant 0 : index
    %3 = vector.load %arg3[%c0, %c0_1, %c0_2, %c0_3] : memref<1x3x2x128xf32, #tpu.memory_space<vmem>>, vector<1x1x2x128xf32>
    %4 = vector.shape_cast %3 : vector<1x1x2x128xf32> to vector<2x128xf32>
    %c0_4 = arith.constant 0 : index
    %c1 = arith.constant 1 : index
    %c0_5 = arith.constant 0 : index
    %c0_6 = arith.constant 0 : index
    %5 = vector.load %arg3[%c0_4, %c1, %c0_5, %c0_6] : memref<1x3x2x128xf32, #tpu.memory_space<vmem>>, vector<1x1x2x128xf32>
    %6 = vector.shape_cast %5 : vector<1x1x2x128xf32> to vector<2x128xf32>
    %c0_7 = arith.constant 0 : index
    %c2 = arith.constant 2 : index
    %c0_8 = arith.constant 0 : index
    %c0_9 = arith.constant 0 : index
    %7 = vector.load %arg3[%c0_7, %c2, %c0_8, %c0_9] : memref<1x3x2x128xf32, #tpu.memory_space<vmem>>, vector<1x1x2x128xf32>
    %8 = vector.shape_cast %7 : vector<1x1x2x128xf32> to vector<2x128xf32>
    %c0_10 = arith.constant 0 : index
    %c0_11 = arith.constant 0 : index
    %c0_12 = arith.constant 0 : index
    %c0_13 = arith.constant 0 : index
    %9 = vector.load %arg4[%c0_10, %c0_11, %c0_12, %c0_13] : memref<1x3x2x128xf32, #tpu.memory_space<vmem>>, vector<1x1x2x128xf32>
    %10 = vector.shape_cast %9 : vector<1x1x2x128xf32> to vector<2x128xf32>
    %c0_14 = arith.constant 0 : index
    %c1_15 = arith.constant 1 : index
    %c0_16 = arith.constant 0 : index
    %c0_17 = arith.constant 0 : index
    %11 = vector.load %arg4[%c0_14, %c1_15, %c0_16, %c0_17] : memref<1x3x2x128xf32, #tpu.memory_space<vmem>>, vector<1x1x2x128xf32>
    %12 = vector.shape_cast %11 : vector<1x1x2x128xf32> to vector<2x128xf32>
    %c0_18 = arith.constant 0 : index
    %c2_19 = arith.constant 2 : index
    %c0_20 = arith.constant 0 : index
    %c0_21 = arith.constant 0 : index
    %13 = vector.load %arg4[%c0_18, %c2_19, %c0_20, %c0_21] : memref<1x3x2x128xf32, #tpu.memory_space<vmem>>, vector<1x1x2x128xf32>
    %14 = vector.shape_cast %13 : vector<1x1x2x128xf32> to vector<2x128xf32>
    %15 = arith.cmpf oge, %4, %6 : vector<2x128xf32>
    %16 = arith.cmpf oge, %4, %8 : vector<2x128xf32>
    %17 = arith.andi %15, %16 : vector<2x128xi1>
    %18 = arith.cmpf ogt, %6, %4 : vector<2x128xf32>
    %19 = arith.cmpf oge, %6, %8 : vector<2x128xf32>
    %20 = arith.andi %18, %19 : vector<2x128xi1>
    %21 = arith.cmpf oge, %10, %12 : vector<2x128xf32>
    %22 = arith.cmpf oge, %10, %14 : vector<2x128xf32>
    %23 = arith.andi %21, %22 : vector<2x128xi1>
    %24 = arith.cmpf ogt, %12, %10 : vector<2x128xf32>
    %25 = arith.cmpf oge, %12, %14 : vector<2x128xf32>
    %26 = arith.andi %24, %25 : vector<2x128xi1>
    %27 = arith.ori %17, %20 : vector<2x128xi1>
    %cst = arith.constant dense<true> : vector<2x128xi1>
    %28 = arith.xori %27, %cst : vector<2x128xi1>
    %29 = arith.ori %23, %26 : vector<2x128xi1>
    %cst_22 = arith.constant dense<true> : vector<2x128xi1>
    %30 = arith.xori %29, %cst_22 : vector<2x128xi1>
    %31 = arith.andi %28, %30 : vector<2x128xi1>
    %32 = arith.andi %17, %23 : vector<2x128xi1>
    %33 = arith.andi %20, %26 : vector<2x128xi1>
    %34 = arith.extui %17 : vector<2x128xi1> to vector<2x128xi32>
    %35 = arith.sitofp %34 : vector<2x128xi32> to vector<2x128xf32>
    %c0_23 = arith.constant 0 : index
    %c0_24 = arith.constant 0 : index
    %c0_25 = arith.constant 0 : index
    %c0_26 = arith.constant 0 : index
    %c0_27 = arith.constant 0 : index
    %36 = vector.load %arg5[%c0_23, %c0_24, %c0_25, %c0_26, %c0_27] : memref<1x1x7x8x128xf32, #tpu.memory_space<vmem>>, vector<1x1x1x1x128xf32>
    %37 = vector.shape_cast %36 : vector<1x1x1x1x128xf32> to vector<1x128xf32>
    %cst_28 = arith.constant dense<0.000000e+00> : vector<128xf32>
    %38 = vector.multi_reduction <add>, %35, %cst_28 [0] : vector<2x128xf32> to vector<128xf32>
    %39 = vector.shape_cast %38 : vector<128xf32> to vector<1x128xf32>
    %40 = arith.addf %37, %39 : vector<1x128xf32>
    %c0_29 = arith.constant 0 : index
    %c0_30 = arith.constant 0 : index
    %c0_31 = arith.constant 0 : index
    %c0_32 = arith.constant 0 : index
    %c0_33 = arith.constant 0 : index
    %41 = vector.load %arg5[%c0_29, %c0_30, %c0_31, %c0_32, %c0_33] : memref<1x1x7x8x128xf32, #tpu.memory_space<vmem>>, vector<1x1x1x1x128xf32>
    %42 = vector.shape_cast %41 : vector<1x1x1x1x128xf32> to vector<1x128xf32>
    %43 = vector.shape_cast %40 : vector<1x128xf32> to vector<1x1x1x1x128xf32>
    tpu.vector_store %arg5[%c0_29, %c0_30, %c0_31, %c0_32, %c0_33], %43 {strides = array<i32>} : memref<1x1x7x8x128xf32, #tpu.memory_space<vmem>>, vector<1x1x1x1x128xf32>,
    %44 = arith.extui %20 : vector<2x128xi1> to vector<2x128xi32>
    %45 = arith.sitofp %44 : vector<2x128xi32> to vector<2x128xf32>
    %c0_34 = arith.constant 0 : index
    %c0_35 = arith.constant 0 : index
    %c1_36 = arith.constant 1 : index
    %c0_37 = arith.constant 0 : index
    %c0_38 = arith.constant 0 : index
    %46 = vector.load %arg5[%c0_34, %c0_35, %c1_36, %c0_37, %c0_38] : memref<1x1x7x8x128xf32, #tpu.memory_space<vmem>>, vector<1x1x1x1x128xf32>
    %47 = vector.shape_cast %46 : vector<1x1x1x1x128xf32> to vector<1x128xf32>
    %cst_39 = arith.constant dense<0.000000e+00> : vector<128xf32>
    %48 = vector.multi_reduction <add>, %45, %cst_39 [0] : vector<2x128xf32> to vector<128xf32>
    %49 = vector.shape_cast %48 : vector<128xf32> to vector<1x128xf32>
    %50 = arith.addf %47, %49 : vector<1x128xf32>
    %c0_40 = arith.constant 0 : index
    %c0_41 = arith.constant 0 : index
    %c1_42 = arith.constant 1 : index
    %c0_43 = arith.constant 0 : index
    %c0_44 = arith.constant 0 : index
    %51 = vector.load %arg5[%c0_40, %c0_41, %c1_42, %c0_43, %c0_44] : memref<1x1x7x8x128xf32, #tpu.memory_space<vmem>>, vector<1x1x1x1x128xf32>
    %52 = vector.shape_cast %51 : vector<1x1x1x1x128xf32> to vector<1x128xf32>
    %53 = vector.shape_cast %50 : vector<1x128xf32> to vector<1x1x1x1x128xf32>
    tpu.vector_store %arg5[%c0_40, %c0_41, %c1_42, %c0_43, %c0_44], %53 {strides = array<i32>} : memref<1x1x7x8x128xf32, #tpu.memory_space<vmem>>, vector<1x1x1x1x128xf32>,
    %54 = arith.extui %23 : vector<2x128xi1> to vector<2x128xi32>
    %55 = arith.sitofp %54 : vector<2x128xi32> to vector<2x128xf32>
    %c0_45 = arith.constant 0 : index
    %c0_46 = arith.constant 0 : index
    %c2_47 = arith.constant 2 : index
    %c0_48 = arith.constant 0 : index
    %c0_49 = arith.constant 0 : index
    %56 = vector.load %arg5[%c0_45, %c0_46, %c2_47, %c0_48, %c0_49] : memref<1x1x7x8x128xf32, #tpu.memory_space<vmem>>, vector<1x1x1x1x128xf32>
    %57 = vector.shape_cast %56 : vector<1x1x1x1x128xf32> to vector<1x128xf32>
    %cst_50 = arith.constant dense<0.000000e+00> : vector<128xf32>
    %58 = vector.multi_reduction <add>, %55, %cst_50 [0] : vector<2x128xf32> to vector<128xf32>
    %59 = vector.shape_cast %58 : vector<128xf32> to vector<1x128xf32>
    %60 = arith.addf %57, %59 : vector<1x128xf32>
    %c0_51 = arith.constant 0 : index
    %c0_52 = arith.constant 0 : index
    %c2_53 = arith.constant 2 : index
    %c0_54 = arith.constant 0 : index
    %c0_55 = arith.constant 0 : index
    %61 = vector.load %arg5[%c0_51, %c0_52, %c2_53, %c0_54, %c0_55] : memref<1x1x7x8x128xf32, #tpu.memory_space<vmem>>, vector<1x1x1x1x128xf32>
    %62 = vector.shape_cast %61 : vector<1x1x1x1x128xf32> to vector<1x128xf32>
    %63 = vector.shape_cast %60 : vector<1x128xf32> to vector<1x1x1x1x128xf32>
    tpu.vector_store %arg5[%c0_51, %c0_52, %c2_53, %c0_54, %c0_55], %63 {strides = array<i32>} : memref<1x1x7x8x128xf32, #tpu.memory_space<vmem>>, vector<1x1x1x1x128xf32>,
    %64 = arith.extui %26 : vector<2x128xi1> to vector<2x128xi32>
    %65 = arith.sitofp %64 : vector<2x128xi32> to vector<2x128xf32>
    %c0_56 = arith.constant 0 : index
    %c0_57 = arith.constant 0 : index
    %c3 = arith.constant 3 : index
    %c0_58 = arith.constant 0 : index
    %c0_59 = arith.constant 0 : index
    %66 = vector.load %arg5[%c0_56, %c0_57, %c3, %c0_58, %c0_59] : memref<1x1x7x8x128xf32, #tpu.memory_space<vmem>>, vector<1x1x1x1x128xf32>
    %67 = vector.shape_cast %66 : vector<1x1x1x1x128xf32> to vector<1x128xf32>
    %cst_60 = arith.constant dense<0.000000e+00> : vector<128xf32>
    %68 = vector.multi_reduction <add>, %65, %cst_60 [0] : vector<2x128xf32> to vector<128xf32>
    %69 = vector.shape_cast %68 : vector<128xf32> to vector<1x128xf32>
    %70 = arith.addf %67, %69 : vector<1x128xf32>
    %c0_61 = arith.constant 0 : index
    %c0_62 = arith.constant 0 : index
    %c3_63 = arith.constant 3 : index
    %c0_64 = arith.constant 0 : index
    %c0_65 = arith.constant 0 : index
    %71 = vector.load %arg5[%c0_61, %c0_62, %c3_63, %c0_64, %c0_65] : memref<1x1x7x8x128xf32, #tpu.memory_space<vmem>>, vector<1x1x1x1x128xf32>
    %72 = vector.shape_cast %71 : vector<1x1x1x1x128xf32> to vector<1x128xf32>
    %73 = vector.shape_cast %70 : vector<1x128xf32> to vector<1x1x1x1x128xf32>
    tpu.vector_store %arg5[%c0_61, %c0_62, %c3_63, %c0_64, %c0_65], %73 {strides = array<i32>} : memref<1x1x7x8x128xf32, #tpu.memory_space<vmem>>, vector<1x1x1x1x128xf32>,
    %74 = arith.extui %32 : vector<2x128xi1> to vector<2x128xi32>
    %75 = arith.sitofp %74 : vector<2x128xi32> to vector<2x128xf32>
    %c0_66 = arith.constant 0 : index
    %c0_67 = arith.constant 0 : index
    %c4 = arith.constant 4 : index
    %c0_68 = arith.constant 0 : index
    %c0_69 = arith.constant 0 : index
    %76 = vector.load %arg5[%c0_66, %c0_67, %c4, %c0_68, %c0_69] : memref<1x1x7x8x128xf32, #tpu.memory_space<vmem>>, vector<1x1x1x1x128xf32>
    %77 = vector.shape_cast %76 : vector<1x1x1x1x128xf32> to vector<1x128xf32>
    %cst_70 = arith.constant dense<0.000000e+00> : vector<128xf32>
    %78 = vector.multi_reduction <add>, %75, %cst_70 [0] : vector<2x128xf32> to vector<128xf32>
    %79 = vector.shape_cast %78 : vector<128xf32> to vector<1x128xf32>
    %80 = arith.addf %77, %79 : vector<1x128xf32>
    %c0_71 = arith.constant 0 : index
    %c0_72 = arith.constant 0 : index
    %c4_73 = arith.constant 4 : index
    %c0_74 = arith.constant 0 : index
    %c0_75 = arith.constant 0 : index
    %81 = vector.load %arg5[%c0_71, %c0_72, %c4_73, %c0_74, %c0_75] : memref<1x1x7x8x128xf32, #tpu.memory_space<vmem>>, vector<1x1x1x1x128xf32>
    %82 = vector.shape_cast %81 : vector<1x1x1x1x128xf32> to vector<1x128xf32>
    %83 = vector.shape_cast %80 : vector<1x128xf32> to vector<1x1x1x1x128xf32>
    tpu.vector_store %arg5[%c0_71, %c0_72, %c4_73, %c0_74, %c0_75], %83 {strides = array<i32>} : memref<1x1x7x8x128xf32, #tpu.memory_space<vmem>>, vector<1x1x1x1x128xf32>,
    %84 = arith.extui %33 : vector<2x128xi1> to vector<2x128xi32>
    %85 = arith.sitofp %84 : vector<2x128xi32> to vector<2x128xf32>
    %c0_76 = arith.constant 0 : index
    %c0_77 = arith.constant 0 : index
    %c5 = arith.constant 5 : index
    %c0_78 = arith.constant 0 : index
    %c0_79 = arith.constant 0 : index
    %86 = vector.load %arg5[%c0_76, %c0_77, %c5, %c0_78, %c0_79] : memref<1x1x7x8x128xf32, #tpu.memory_space<vmem>>, vector<1x1x1x1x128xf32>
    %87 = vector.shape_cast %86 : vector<1x1x1x1x128xf32> to vector<1x128xf32>
    %cst_80 = arith.constant dense<0.000000e+00> : vector<128xf32>
    %88 = vector.multi_reduction <add>, %85, %cst_80 [0] : vector<2x128xf32> to vector<128xf32>
    %89 = vector.shape_cast %88 : vector<128xf32> to vector<1x128xf32>
    %90 = arith.addf %87, %89 : vector<1x128xf32>
    %c0_81 = arith.constant 0 : index
    %c0_82 = arith.constant 0 : index
    %c5_83 = arith.constant 5 : index
    %c0_84 = arith.constant 0 : index
    %c0_85 = arith.constant 0 : index
    %91 = vector.load %arg5[%c0_81, %c0_82, %c5_83, %c0_84, %c0_85] : memref<1x1x7x8x128xf32, #tpu.memory_space<vmem>>, vector<1x1x1x1x128xf32>
    %92 = vector.shape_cast %91 : vector<1x1x1x1x128xf32> to vector<1x128xf32>
    %93 = vector.shape_cast %90 : vector<1x128xf32> to vector<1x1x1x1x128xf32>
    tpu.vector_store %arg5[%c0_81, %c0_82, %c5_83, %c0_84, %c0_85], %93 {strides = array<i32>} : memref<1x1x7x8x128xf32, #tpu.memory_space<vmem>>, vector<1x1x1x1x128xf32>,
    %94 = arith.extui %31 : vector<2x128xi1> to vector<2x128xi32>
    %95 = arith.sitofp %94 : vector<2x128xi32> to vector<2x128xf32>
    %c0_86 = arith.constant 0 : index
    %c0_87 = arith.constant 0 : index
    %c6 = arith.constant 6 : index
    %c0_88 = arith.constant 0 : index
    %c0_89 = arith.constant 0 : index
    %96 = vector.load %arg5[%c0_86, %c0_87, %c6, %c0_88, %c0_89] : memref<1x1x7x8x128xf32, #tpu.memory_space<vmem>>, vector<1x1x1x1x128xf32>
    %97 = vector.shape_cast %96 : vector<1x1x1x1x128xf32> to vector<1x128xf32>
    %cst_90 = arith.constant dense<0.000000e+00> : vector<128xf32>
    %98 = vector.multi_reduction <add>, %95, %cst_90 [0] : vector<2x128xf32> to vector<128xf32>
    %99 = vector.shape_cast %98 : vector<128xf32> to vector<1x128xf32>
    %100 = arith.addf %97, %99 : vector<1x128xf32>
    %c0_91 = arith.constant 0 : index
    %c0_92 = arith.constant 0 : index
    %c6_93 = arith.constant 6 : index
    %c0_94 = arith.constant 0 : index
    %c0_95 = arith.constant 0 : index
    %101 = vector.load %arg5[%c0_91, %c0_92, %c6_93, %c0_94, %c0_95] : memref<1x1x7x8x128xf32, #tpu.memory_space<vmem>>, vector<1x1x1x1x128xf32>
    %102 = vector.shape_cast %101 : vector<1x1x1x1x128xf32> to vector<1x128xf32>
    %103 = vector.shape_cast %100 : vector<1x128xf32> to vector<1x1x1x1x128xf32>
    tpu.vector_store %arg5[%c0_91, %c0_92, %c6_93, %c0_94, %c0_95], %103 {strides = array<i32>} : memref<1x1x7x8x128xf32, #tpu.memory_space<vmem>>, vector<1x1x1x1x128xf32>,
    return
  }
  func.func @transform_0(%arg0: i32, %arg1: i32, %arg2: i32) -> (i32, i32, i32, i32) {
    %c1_i32 = arith.constant 1 : i32
    %0 = arith.muli %arg1, %c1_i32 : i32
    %1 = arith.addi %0, %arg2 : i32
    %c0_i32 = arith.constant 0 : i32
    %2 = arith.minsi %1, %c0_i32 : i32
    %c0_i32_0 = arith.constant 0 : i32
    %c0_i32_1 = arith.constant 0 : i32
    %c0_i32_2 = arith.constant 0 : i32
    return %arg0, %c0_i32_0, %2, %c0_i32_1 : i32, i32, i32, i32
  }
  func.func @transform_1(%arg0: i32, %arg1: i32, %arg2: i32) -> (i32, i32, i32, i32) {
    %c1_i32 = arith.constant 1 : i32
    %0 = arith.muli %arg1, %c1_i32 : i32
    %1 = arith.addi %0, %arg2 : i32
    %c0_i32 = arith.constant 0 : i32
    %2 = arith.minsi %1, %c0_i32 : i32
    %c0_i32_0 = arith.constant 0 : i32
    %c0_i32_1 = arith.constant 0 : i32
    %c0_i32_2 = arith.constant 0 : i32
    return %arg0, %c0_i32_0, %2, %c0_i32_1 : i32, i32, i32, i32
  }
  func.func @transform_2(%arg0: i32, %arg1: i32, %arg2: i32) -> (i32, i32, i32, i32, i32) {
    %c0_i32 = arith.constant 0 : i32
    %c0_i32_0 = arith.constant 0 : i32
    %c0_i32_1 = arith.constant 0 : i32
    %c0_i32_2 = arith.constant 0 : i32
    return %arg0, %arg1, %c0_i32, %c0_i32_0, %c0_i32_1 : i32, i32, i32, i32, i32
  }
}

</mosaic_0001>

<llo_original>
// kernel: iou_multiple.1
$region0: #{iou_multiple.1}
  #allocation0 [shape = 'u32[]', space=smem, size = 0x4, offset = 0x4, fixed_abs, tag = 'smem constant byte address 0x4 - core index']
  #allocation1 [shape = 'u32[144,128]{1,0:T(1,128)}', space=vmem, size = 0x12000, scoped, tag = 'internal scratch']
  %s0 = inlined_call_operand.vmem [shape: f32[2,3,2,128], index: 0, kind: input, shape index: {}]
  %s1 = inlined_call_operand.vmem [shape: f32[2,3,2,128], index: 1, kind: input, shape index: {}]
  %s2 = inlined_call_operand.vmem [shape: f32[2,1,7,8,128], index: 2, kind: output, shape index: {}]
  %s3 = sld [smem:[#allocation0]]
  $region45: #{iou_multiple.1} parent=0
    _
  %s5 = ssub.s32 1, %s3
  %s6 = scalar_select 0, %s5, %s3
  loop: start=0, step=1, limit=4
  $region2: #{iou_multiple.1} parent=0 // loop_pre_header
    _
  $region3: #{iou_multiple.1} parent=0 // loop_header
    %s8 = sphi 0, %s12
    %p9 = scmp.ge.s32.totalorder %s8, 4
    %s15 = sphi 0, %s34
    %s16 = sphi 0, %s30
    %s17 = sphi 0, %s26
    %s18 = sphi 0, %s15
    %s19 = sphi 0, %s16
    %s20 = sphi 0, %s17
    %s21 = sphi 0, %s18
    %s22 = sphi 0, %s19
    %s23 = sphi 0, %s20
    %s45 = sphi 0, %s47
    %s48 = sphi 0, %s45
    %s49 = sphi 0, %s48
    %s65 = sphi 0, %s49
    %s79 = sphi 0, %s81
    %s82 = sphi 0, %s79
    %s83 = sphi 0, %s82
    %s99 = sphi 0, %s83
    %s107 = sphi 0, %s109
    %s110 = sphi 0, %s107
    %s111 = sphi 0, %s110
    %s127 = sphi 0, %s111
  $region4: #{iou_multiple.1} parent=0 // loop_header_branch
    %11 = sbr.rel (%p9) target = $region8
  $region5: #{iou_multiple.1} parent=0 // loop_body
    %s13 = ssub.s32 %s8, 1
    %s14 = ssub.s32 %s8, 2
    %s24 = sadd.s32 1, %s17
    %p25 = scmp.ge.s32.totalorder %s24, 1
    %s26 = scalar_select %p25, 0, %s24
    %s27 = sadd.s32 1, %s16
    %s28 = scalar_select %p25, %s27, %s16
    %p29 = scmp.ge.s32.totalorder %s28, 1
    %s30 = scalar_select %p29, 0, %s28
    %s31 = sadd.s32 1, %s15
    %s32 = scalar_select %p29, %s31, %s15
    %p33 = scmp.ge.s32.totalorder %s32, 2
    %s34 = scalar_select %p33, 0, %s32
    %s35 = sadd.s32 %s16, %s17
    %p36 = scmp.lt.s32.totalorder %s35, 0
    %s37 = scalar_select %p36, %s35, 0
    %s38 = sadd.s32 %s30, %s26
    %p39 = scmp.lt.s32.totalorder %s38, 0
    %s40 = scalar_select %p39, %s38, 0
    %s41 = ssub.s32 %s15, %s34
    %s42 = ssub.s32 %s37, %s40
    %s43 = sor.u32 %s41, %s42
    %p44 = scmp.eq.s32.totalorder %s43, 0
    %s46 = sadd.s32 %s45, 1
    %s47 = scalar_select %p44, %s45, %s46
    %p50 = pneg %p44
    %p51 = scmp.eq.s32.totalorder %s8, 1
    %p52 = por %p50, %p51
    %p53 = scmp.ne.s32.totalorder %s45, %s48
    %p54 = scmp.eq.s32.totalorder %s8, 0
    %p55 = por %p53, %p54
    %p56 = scmp.ne.s32.totalorder %s45, %s48
    %p57 = scmp.eq.s32.totalorder %s13, 1
    %p58 = por %p56, %p57
    %p59 = scmp.ne.s32.totalorder %s48, %s49
    %p60 = scmp.eq.s32.totalorder %s13, 0
    %p61 = por %p59, %p60
    %p62 = scmp.ne.s32.totalorder %s48, %s49
    %p63 = scmp.eq.s32.totalorder %s14, 1
    %p64 = por %p62, %p63
    %p66 = scmp.ne.s32.totalorder %s49, %s65
    %p67 = scmp.eq.s32.totalorder %s14, 0
    %p68 = por %p66, %p67
    %s69 = sadd.s32 %s16, %s17
    %p70 = scmp.lt.s32.totalorder %s69, 0
    %s71 = scalar_select %p70, %s69, 0
    %s72 = sadd.s32 %s30, %s26
    %p73 = scmp.lt.s32.totalorder %s72, 0
    %s74 = scalar_select %p73, %s72, 0
    %s75 = ssub.s32 %s15, %s34
    %s76 = ssub.s32 %s71, %s74
    %s77 = sor.u32 %s75, %s76
    %p78 = scmp.eq.s32.totalorder %s77, 0
    %s80 = sadd.s32 %s79, 1
    %s81 = scalar_select %p78, %s79, %s80
    %p84 = pneg %p78
    %p85 = scmp.eq.s32.totalorder %s8, 1
    %p86 = por %p84, %p85
    %p87 = scmp.ne.s32.totalorder %s79, %s82
    %p88 = scmp.eq.s32.totalorder %s8, 0
    %p89 = por %p87, %p88
    %p90 = scmp.ne.s32.totalorder %s79, %s82
    %p91 = scmp.eq.s32.totalorder %s13, 1
    %p92 = por %p90, %p91
    %p93 = scmp.ne.s32.totalorder %s82, %s83
    %p94 = scmp.eq.s32.totalorder %s13, 0
    %p95 = por %p93, %p94
    %p96 = scmp.ne.s32.totalorder %s82, %s83
    %p97 = scmp.eq.s32.totalorder %s14, 1
    %p98 = por %p96, %p97
    %p100 = scmp.ne.s32.totalorder %s83, %s99
    %p101 = scmp.eq.s32.totalorder %s14, 0
    %p102 = por %p100, %p101
    %s103 = ssub.s32 %s15, %s34
    %s104 = ssub.s32 %s16, %s30
    %s105 = sor.u32 %s103, %s104
    %p106 = scmp.eq.s32.totalorder %s105, 0
    %s108 = sadd.s32 %s107, 1
    %s109 = scalar_select %p106, %s107, %s108
    %p112 = pneg %p106
    %p113 = scmp.eq.s32.totalorder %s8, 1
    %p114 = por %p112, %p113
    %p115 = scmp.ne.s32.totalorder %s107, %s110
    %p116 = scmp.eq.s32.totalorder %s8, 0
    %p117 = por %p115, %p116
    %p118 = scmp.ne.s32.totalorder %s107, %s110
    %p119 = scmp.eq.s32.totalorder %s13, 1
    %p120 = por %p118, %p119
    %p121 = scmp.ne.s32.totalorder %s110, %s111
    %p122 = scmp.eq.s32.totalorder %s13, 0
    %p123 = por %p121, %p122
    %p124 = scmp.ne.s32.totalorder %s110, %s111
    %p125 = scmp.eq.s32.totalorder %s14, 1
    %p126 = por %p124, %p125
    %p128 = scmp.ne.s32.totalorder %s111, %s127
    %p129 = scmp.eq.s32.totalorder %s14, 0
    %p130 = por %p128, %p129
    %p131 = scmp.le.s32.totalorder 1, %s8
    %p132 = scmp.lt.s32.totalorder %s8, 3
    %p133 = pnand %p131, %p132
    %p134 = pneg %p133
    // Predicated region
    $region9: #{iou_multiple.1} parent=5 // pred_check
      _
    $region10: #{iou_multiple.1} parent=5 // pred_check_branch
      %136 = sbr.rel (%p133) target = $region12
    $region11: #{iou_multiple.1} parent=5 // pred_region
      %s137 = ssub.s32 %s8, 1
    $region12: #{iou_multiple.1} parent=5 // pred_fallthru
      _
    %p138 = scmp.lt.s32.totalorder %s8, 2
    // Predicated region
    $region13: #{iou_multiple.1} parent=5 // pred_check
      %p139 = pneg %p138
    $region14: #{iou_multiple.1} parent=5 // pred_check_branch
      %141 = sbr.rel (%p139) target = $region16
    $region15: #{iou_multiple.1} parent=5 // pred_region
      // Predicated region
      $region17: #{iou_multiple.1} parent=15 // pred_check
        %p142 = pneg %p55
      $region18: #{iou_multiple.1} parent=15 // pred_check_branch
        %144 = sbr.rel (%p142) target = $region20
      $region19: #{iou_multiple.1} parent=15 // pred_region
        %s145 = sadd.s32 %s16, %s17
        %p146 = scmp.lt.s32.totalorder %s145, 0
        %s147 = scalar_select %p146, %s145, 0
        %p148 = scmp.lt.s32.totalorder %s15, 1
        %s149 = scalar_select %p148, %s15, 1
        %p150 = scmp.lt.s32.totalorder %s147, 0
        %s151 = scalar_select %p150, %s147, 0
        %s152 = smul.addr %s149, 3
        %s153 = sadd.s32 %s151, %s152
        %s154 = smul.addr %s153, 2
        %s155 = scalar_lea.vmem %s0, %s154
        %s156 = sadd.s32 %s16, %s17
        %p157 = scmp.lt.s32.totalorder %s156, 0
        %s158 = scalar_select %p157, %s156, 0
      $region20: #{iou_multiple.1} parent=15 // pred_fallthru
        _
      // Predicated region
      $region21: #{iou_multiple.1} parent=15 // pred_check
        %p159 = pneg %p89
      $region22: #{iou_multiple.1} parent=15 // pred_check_branch
        %161 = sbr.rel (%p159) target = $region24
      $region23: #{iou_multiple.1} parent=15 // pred_region
        %s162 = sadd.s32 %s16, %s17
        %p163 = scmp.lt.s32.totalorder %s162, 0
        %s164 = scalar_select %p163, %s162, 0
        %p165 = scmp.lt.s32.totalorder %s15, 1
        %s166 = scalar_select %p165, %s15, 1
        %p167 = scmp.lt.s32.totalorder %s164, 0
        %s168 = scalar_select %p167, %s164, 0
        %s169 = smul.addr %s166, 3
        %s170 = sadd.s32 %s168, %s169
        %s171 = smul.addr %s170, 2
        %s172 = scalar_lea.vmem %s1, %s171
        %s173 = sadd.s32 %s16, %s17
        %p174 = scmp.lt.s32.totalorder %s173, 0
        %s175 = scalar_select %p174, %s173, 0
      $region24: #{iou_multiple.1} parent=15 // pred_fallthru
        _
    $region16: #{iou_multiple.1} parent=5 // pred_fallthru
      _
    %p176 = scmp.le.s32.totalorder 1, %s8
    %p177 = scmp.lt.s32.totalorder %s8, 3
    %p178 = pnand %p176, %p177
    %p179 = pneg %p178
    // Predicated region
    $region25: #{iou_multiple.1} parent=5 // pred_check
      _
    $region26: #{iou_multiple.1} parent=5 // pred_check_branch
      %181 = sbr.rel (%p178) target = $region28
    $region27: #{iou_multiple.1} parent=5 // pred_region
      %s182 = ssub.s32 %s8, 1
      %s183 = sadd.s32 %s19, %s20
      %p184 = scmp.lt.s32.totalorder %s183, 0
      %s185 = scalar_select %p184, %s183, 0
      %p186 = scmp.lt.s32.totalorder %s18, 1
      %s187 = scalar_select %p186, %s18, 1
      %p188 = scmp.lt.s32.totalorder %s185, 0
      %s189 = scalar_select %p188, %s185, 0
      %s190 = smul.addr %s187, 3
      %s191 = sadd.s32 %s189, %s190
      %s192 = smul.addr %s191, 2
      %s193 = scalar_lea.vmem %s0, %s192
      %p194 = pneg %p61
      %p195 = pneg %p58
      %s196 = sadd.s32 %s19, %s20
      %p197 = scmp.lt.s32.totalorder %s196, 0
      %s198 = scalar_select %p197, %s196, 0
      %p199 = scmp.lt.s32.totalorder %s18, 1
      %s200 = scalar_select %p199, %s18, 1
      %p201 = scmp.lt.s32.totalorder %s198, 0
      %s202 = scalar_select %p201, %s198, 0
      %s203 = smul.addr %s200, 3
      %s204 = sadd.s32 %s202, %s203
      %s205 = smul.addr %s204, 2
      %s206 = scalar_lea.vmem %s1, %s205
      %p207 = pneg %p95
      %p208 = pneg %p92
      %p209 = pneg %p123
      %p210 = pneg %p120
      %p211 = scmp.lt.s32.totalorder %s18, 1
      %s212 = scalar_select %p211, %s18, 1
      %p213 = scmp.lt.s32.totalorder %s19, 0
      %s214 = scalar_select %p213, %s19, 0
      %s215 = smul.addr %s214, 7
      %s216 = smul.addr %s212, 7
      %s217 = sadd.s32 %s215, %s216
      %s218 = smul.addr %s217, 8
      %s219 = scalar_lea.vmem %s2, %s218
      %s220 = sadd.s32 %s19, %s20
      %p221 = scmp.lt.s32.totalorder %s220, 0
      %s222 = scalar_select %p221, %s220, 0
      %p223 = scmp.lt.s32.totalorder %s18, 1
      %s224 = scalar_select %p223, %s18, 1
      %p225 = scmp.lt.s32.totalorder %s222, 0
      %s226 = scalar_select %p225, %s222, 0
      %s227 = smul.addr %s224, 3
      %s228 = sadd.s32 %s226, %s227
      %s229 = smul.addr %s228, 2
      %s230 = scalar_lea.vmem %s0, %s229
      %s231 = sadd.s32 %s19, %s20
      %p232 = scmp.lt.s32.totalorder %s231, 0
      %s233 = scalar_select %p232, %s231, 0
      %s234 = sadd.s32 %s19, %s20
      %p235 = scmp.lt.s32.totalorder %s234, 0
      %s236 = scalar_select %p235, %s234, 0
      %p237 = scmp.lt.s32.totalorder %s18, 1
      %s238 = scalar_select %p237, %s18, 1
      %p239 = scmp.lt.s32.totalorder %s236, 0
      %s240 = scalar_select %p239, %s236, 0
      %s241 = smul.addr %s238, 3
      %s242 = sadd.s32 %s240, %s241
      %s243 = smul.addr %s242, 2
      %s244 = scalar_lea.vmem %s1, %s243
      %s245 = sadd.s32 %s19, %s20
      %p246 = scmp.lt.s32.totalorder %s245, 0
      %s247 = scalar_select %p246, %s245, 0
      %p248 = scmp.lt.s32.totalorder %s18, 1
      %s249 = scalar_select %p248, %s18, 1
      %p250 = scmp.lt.s32.totalorder %s19, 0
      %s251 = scalar_select %p250, %s19, 0
      %s252 = smul.addr %s251, 7
      %s253 = smul.addr %s249, 7
      %s254 = sadd.s32 %s252, %s253
      %s255 = smul.addr %s254, 8
      %s256 = scalar_lea.vmem %s2, %s255
      %p257 = scmp.eq.s32.totalorder %s20, 0
      // Predicated region
      $region29: #{iou_multiple.1} parent=27 // pred_check
        %p258 = pneg %p257
      $region30: #{iou_multiple.1} parent=27 // pred_check_branch
        %260 = sbr.rel (%p258) target = $region32
      $region31: #{iou_multiple.1} parent=27 // pred_region
        %261 = vst [vmem:[%s256] sm:$0xff] 0.0
        %262 = vst [vmem:[%s256 + $0x8] sm:$0xff] 0.0
        %263 = vst [vmem:[%s256 + $0x10] sm:$0xff] 0.0
        %264 = vst [vmem:[%s256 + $0x18] sm:$0xff] 0.0
        %265 = vst [vmem:[%s256 + $0x20] sm:$0xff] 0.0
        %266 = vst [vmem:[%s256 + $0x28] sm:$0xff] 0.0
        %267 = vst [vmem:[%s256 + $0x30] sm:$0xff] 0.0
      $region32: #{iou_multiple.1} parent=27 // pred_fallthru
        _
      %v268 = vld [vmem:[%s230] sm:$0x3]
      %s269 = scalar_lea.vmem %s230, 2
      %v270 = vld [vmem:[%s269] sm:$0x3]
      %s271 = scalar_lea.vmem %s230, 4
      %v272 = vld [vmem:[%s271] sm:$0x3]
      %v273 = vld [vmem:[%s244] sm:$0x3]
      %s274 = scalar_lea.vmem %s244, 2
      %v275 = vld [vmem:[%s274] sm:$0x3]
      %s276 = scalar_lea.vmem %s244, 4
      %v277 = vld [vmem:[%s276] sm:$0x3]
      %vm278 = vcmp.ge.f32.partialorder %v268, %v270
      %vm279 = vcmp.ge.f32.partialorder %v268, %v272
      %vm280 = vmand %vm278, %vm279
      %vm281 = vcmp.gt.f32.partialorder %v270, %v268
      %vm282 = vcmp.ge.f32.partialorder %v270, %v272
      %vm283 = vmand %vm281, %vm282
      %vm284 = vcmp.ge.f32.partialorder %v273, %v275
      %vm285 = vcmp.ge.f32.partialorder %v273, %v277
      %vm286 = vmand %vm284, %vm285
      %vm287 = vcmp.gt.f32.partialorder %v275, %v273
      %vm288 = vcmp.ge.f32.partialorder %v275, %v277
      %vm289 = vmand %vm287, %vm288
      %vm290 = vmor %vm280, %vm283
      %vm291 = vmxor %vm290, 1
      %vm292 = vmor %vm286, %vm289
      %vm293 = vmxor %vm292, 1
      %vm294 = vmand %vm291, %vm293
      %vm295 = vmand %vm280, %vm286
      %vm296 = vmand %vm283, %vm289
      %v297 = vsel %vm280, 1, 0
      %v298 = vcvt.s32.f32 %v297
      %v299 = vld [vmem:[%s256] sm:$0x1]
      %vm300 = vcmask 1041408
      %v301 = vsel %vm300, %v298, 0.0
      %v302 = vrot.slane %v301, 4
      %v303 = vadd.f32 %v301, %v302
      %v304 = vrot.slane %v303, 2
      %v305 = vadd.f32 %v303, %v304
      %v306 = vrot.slane %v305, 1
      %v307 = vadd.f32 %v305, %v306
      %v308 = vadd.f32 %v299, %v307
      %309 = vst [vmem:[%s256] sm:$0x1] %v308
      %v310 = vsel %vm283, 1, 0
      %v311 = vcvt.s32.f32 %v310
      %s312 = scalar_lea.vmem %s256, 8
      %v313 = vld [vmem:[%s312] sm:$0x1]
      %v314 = vsel %vm300, %v311, 0.0
      %v315 = vrot.slane %v314, 4
      %v316 = vadd.f32 %v314, %v315
      %v317 = vrot.slane %v316, 2
      %v318 = vadd.f32 %v316, %v317
      %v319 = vrot.slane %v318, 1
      %v320 = vadd.f32 %v318, %v319
      %v321 = vadd.f32 %v313, %v320
      %322 = vst [vmem:[%s312] sm:$0x1] %v321
      %v323 = vsel %vm286, 1, 0
      %v324 = vcvt.s32.f32 %v323
      %s325 = scalar_lea.vmem %s256, 16
      %v326 = vld [vmem:[%s325] sm:$0x1]
      %v327 = vsel %vm300, %v324, 0.0
      %v328 = vrot.slane %v327, 4
      %v329 = vadd.f32 %v327, %v328
      %v330 = vrot.slane %v329, 2
      %v331 = vadd.f32 %v329, %v330
      %v332 = vrot.slane %v331, 1
      %v333 = vadd.f32 %v331, %v332
      %v334 = vadd.f32 %v326, %v333
      %335 = vst [vmem:[%s325] sm:$0x1] %v334
      %v336 = vsel %vm289, 1, 0
      %v337 = vcvt.s32.f32 %v336
      %s338 = scalar_lea.vmem %s256, 24
      %v339 = vld [vmem:[%s338] sm:$0x1]
      %v340 = vsel %vm300, %v337, 0.0
      %v341 = vrot.slane %v340, 4
      %v342 = vadd.f32 %v340, %v341
      %v343 = vrot.slane %v342, 2
      %v344 = vadd.f32 %v342, %v343
      %v345 = vrot.slane %v344, 1
      %v346 = vadd.f32 %v344, %v345
      %v347 = vadd.f32 %v339, %v346
      %348 = vst [vmem:[%s338] sm:$0x1] %v347
      %v349 = vsel %vm295, 1, 0
      %v350 = vcvt.s32.f32 %v349
      %s351 = scalar_lea.vmem %s256, 32
      %v352 = vld [vmem:[%s351] sm:$0x1]
      %v353 = vsel %vm300, %v350, 0.0
      %v354 = vrot.slane %v353, 4
      %v355 = vadd.f32 %v353, %v354
      %v356 = vrot.slane %v355, 2
      %v357 = vadd.f32 %v355, %v356
      %v358 = vrot.slane %v357, 1
      %v359 = vadd.f32 %v357, %v358
      %v360 = vadd.f32 %v352, %v359
      %361 = vst [vmem:[%s351] sm:$0x1] %v360
      %v362 = vsel %vm296, 1, 0
      %v363 = vcvt.s32.f32 %v362
      %s364 = scalar_lea.vmem %s256, 40
      %v365 = vld [vmem:[%s364] sm:$0x1]
      %v366 = vsel %vm300, %v363, 0.0
      %v367 = vrot.slane %v366, 4
      %v368 = vadd.f32 %v366, %v367
      %v369 = vrot.slane %v368, 2
      %v370 = vadd.f32 %v368, %v369
      %v371 = vrot.slane %v370, 1
      %v372 = vadd.f32 %v370, %v371
      %v373 = vadd.f32 %v365, %v372
      %374 = vst [vmem:[%s364] sm:$0x1] %v373
      %v375 = vsel %vm294, 1, 0
      %v376 = vcvt.s32.f32 %v375
      %s377 = scalar_lea.vmem %s256, 48
      %v378 = vld [vmem:[%s377] sm:$0x1]
      %v379 = vsel %vm300, %v376, 0.0
      %v380 = vrot.slane %v379, 4
      %v381 = vadd.f32 %v379, %v380
      %v382 = vrot.slane %v381, 2
      %v383 = vadd.f32 %v381, %v382
      %v384 = vrot.slane %v383, 1
      %v385 = vadd.f32 %v383, %v384
      %v386 = vadd.f32 %v378, %v385
      %387 = vst [vmem:[%s377] sm:$0x1] %v386
      %p388 = scmp.lt.s32.totalorder %s18, 1
      %s389 = scalar_select %p388, %s18, 1
      %p390 = scmp.lt.s32.totalorder %s19, 0
      %s391 = scalar_select %p390, %s19, 0
      %s392 = smul.addr %s391, 7
      %s393 = smul.addr %s389, 7
      %s394 = sadd.s32 %s392, %s393
      %s395 = smul.addr %s394, 8
      %s396 = scalar_lea.vmem %s2, %s395
      // Predicated region
      $region33: #{iou_multiple.1} parent=27 // pred_check
        %p397 = pneg %p120
      $region34: #{iou_multiple.1} parent=27 // pred_check_branch
        %399 = sbr.rel (%p397) target = $region36
      $region35: #{iou_multiple.1} parent=27 // pred_region
        _
      $region36: #{iou_multiple.1} parent=27 // pred_fallthru
        _
    $region28: #{iou_multiple.1} parent=5 // pred_fallthru
      _
    %p400 = scmp.le.s32.totalorder 2, %s8
    // Predicated region
    $region37: #{iou_multiple.1} parent=5 // pred_check
      %p401 = pneg %p400
    $region38: #{iou_multiple.1} parent=5 // pred_check_branch
      %403 = sbr.rel (%p401) target = $region40
    $region39: #{iou_multiple.1} parent=5 // pred_region
      %s404 = ssub.s32 %s8, 2
      // Predicated region
      $region41: #{iou_multiple.1} parent=39 // pred_check
        %p405 = pneg %p126
      $region42: #{iou_multiple.1} parent=39 // pred_check_branch
        %407 = sbr.rel (%p405) target = $region44
      $region43: #{iou_multiple.1} parent=39 // pred_region
        %p408 = scmp.lt.s32.totalorder %s21, 1
        %s409 = scalar_select %p408, %s21, 1
        %p410 = scmp.lt.s32.totalorder %s22, 0
        %s411 = scalar_select %p410, %s22, 0
        %s412 = smul.addr %s411, 7
        %s413 = smul.addr %s409, 7
        %s414 = sadd.s32 %s412, %s413
        %s415 = smul.addr %s414, 8
        %s416 = scalar_lea.vmem %s2, %s415
      $region44: #{iou_multiple.1} parent=39 // pred_fallthru
        _
    $region40: #{iou_multiple.1} parent=5 // pred_fallthru
      _
  $region6: #{iou_multiple.1} parent=0 // loop_footer
    %s12 = sadd.s32 1, %s8
  $region7: #{iou_multiple.1} parent=0 // loop_footer_branch
    %7 = sbr.rel target = $region3
  $region8: #{iou_multiple.1} parent=0 // loop_exit
    _

</llo_original>
